<compile_context>
chip_gen: v7x
topology: tpu7x:2x2x1
jax: 0.10.0
libtpu: 0.0.40
codegen_flags: <defaults>
</compile_context>

<pallas_src>
import jax
import jax.numpy as jnp
from jax.experimental import pallas as pl
from jax.experimental.pallas import tpu as pltpu

LN_EPS = 1e-5  # nn.LayerNorm default


def _mlp_head_kernel(cls_ref, gamma_ref, beta_ref, w_ref, b_ref, o_ref):
    # cls_ref:   (B, D)    resident across the grid (constant index_map)
    # gamma_ref: (1, D), beta_ref: (1, D)    resident
    # w_ref:     (D, TN)   streamed weight tile (pre-transposed at init)
    # b_ref:     (1, TN)   streamed bias tile
    # o_ref:     (B, TN)   lane-dense output tile
    x = cls_ref[...].astype(jnp.float32)

    # LayerNorm over D (biased variance, like torch.nn.LayerNorm).  Recomputed
    # per class tile: tiny (B, D) work, fully hidden under the TN*D weight DMA.
    mean = jnp.mean(x, axis=-1, keepdims=True)
    centered = x - mean
    var = jnp.mean(centered * centered, axis=-1, keepdims=True)
    x_norm = centered * jax.lax.rsqrt(var + LN_EPS)
    x_norm = (x_norm * gamma_ref[...].astype(jnp.float32)
              + beta_ref[...].astype(jnp.float32))

    # Linear head: (B, D) @ (D, TN) -> (B, TN).  Feed the MXU in the weight's
    # native dtype (bf16 weights hit the bf16 MXU path); accumulate in f32.
    out = jnp.dot(x_norm.astype(w_ref.dtype), w_ref[...],
                  preferred_element_type=jnp.float32)
    out = out + b_ref[...].astype(jnp.float32)
    o_ref[...] = out.astype(o_ref.dtype)


def _generation_budgets():
    """(per-weight-buffer tile budget bytes, scoped-VMEM cap bytes) per TPU gen."""
    kind = ""
    try:
        kind = jax.devices()[0].device_kind.lower()
    except Exception:
        pass
    if "v7" in kind or "7x" in kind:
        # 3.2 TB/s per TC but only 64 MiB VMEM per TC: big tiles, 48 MiB cap.
        return 12 * 1024 * 1024, 48 * 1024 * 1024
    if "v6" in kind:
        return 8 * 1024 * 1024, 64 * 1024 * 1024
    if "v5" in kind:
        return 6 * 1024 * 1024, 64 * 1024 * 1024
    # Unknown generation: conservative defaults.
    return 8 * 1024 * 1024, 48 * 1024 * 1024


def _pick_class_tile(C, D, w_itemsize, budget_bytes):
    """Class-tile width TN (multiple of 128 when tiling kicks in).

    Big enough to amortize the ~0.35us per-grid-step overhead against the
    TN*D weight DMA (generation-specific budget), but never a single tile when
    C is splittable on 128-lane boundaries, so the 'parallel' class axis
    shards across both v7x TensorCores and the weight stream is pipelined.
    The tile count is kept even (best effort) for balanced megacore work.
    """
    if C < 256:
        return C  # cannot form two 128-aligned tiles -> full extent, grid=(1,)
    n_blocks = pl.cdiv(C, 128)
    k_budget = max(1, budget_bytes // (128 * D * w_itemsize))
    k = min(k_budget, n_blocks)
    num_tiles = pl.cdiv(n_blocks, k)
    if num_tiles < 2:
        num_tiles = 2
    if num_tiles % 2 != 0 and num_tiles < n_blocks:
        num_tiles += 1
    k = pl.cdiv(n_blocks, num_tiles)   # never exceeds k_budget
    return k * 128


def _validate_class_tile(class_tile, C):
    """Round a user tile to a 128 multiple (lane constraint) or clamp to full C."""
    tn = int(class_tile)
    if tn >= C:
        return C
    tn = max(128, (tn // 128) * 128)
    return min(tn, C)


def prepare_mlp_head_params(gamma, beta, weight, bias, *, weight_dtype=None):
    """One-time, at model load.  weight is PyTorch nn.Linear (C, D) = (out, in).

    Pre-transposes the weight to (D, C) so the kernel uses a plain MXU
    contraction (no per-call weight.T, no in-kernel transposes), and optionally
    casts it (bf16 halves the HBM weight stream -- the dominant cost -- while
    accumulation stays f32).
    """
    C, D = weight.shape
    w_t = jnp.asarray(weight).T                       # (D, C); paid once at init
    if weight_dtype is not None:
        w_t = w_t.astype(weight_dtype)
    return {
        "gamma": jnp.asarray(gamma).reshape(1, D),
        "beta": jnp.asarray(beta).reshape(1, D),
        "w_t": w_t,
        "bias": jnp.asarray(bias).reshape(1, C),
    }


def mlp_head(x, params, *, class_tile=None):
    """x: (B, S, D); params from prepare_mlp_head_params.  Returns (B, C)."""
    B, S, D = x.shape
    w_t = params["w_t"]
    assert w_t.shape[0] == D, "weight must be pre-transposed to (D, C)"
    C = w_t.shape[1]
    gamma2, beta2, bias2 = params["gamma"], params["beta"], params["bias"]

    cls = x[:, 0, :]                                  # (B, D); LN commutes with this slice

    w_itemsize = jnp.dtype(w_t.dtype).itemsize
    x_itemsize = jnp.dtype(x.dtype).itemsize
    budget_bytes, vmem_cap = _generation_budgets()

    if class_tile is not None:
        tn = _validate_class_tile(class_tile, C)
    else:
        tn = _pick_class_tile(C, D, w_itemsize, budget_bytes)
    grid = (pl.cdiv(C, tn),)

    cost = pl.CostEstimate(
        flops=2 * B * D * C,
        transcendentals=B * grid[0],
        bytes_accessed=(C * D * w_itemsize
                        + B * D * x_itemsize
                        + C * jnp.dtype(bias2.dtype).itemsize
                        + B * C * x_itemsize),
    )

    # Scoped-VMEM budget: double-buffered weight tile dominates; add the
    # (small) double-buffered bias/output tiles plus slack for residents.
    weight_db = 2 * tn * D * w_itemsize
    out_db = 2 * B * tn * x_itemsize
    bias_db = 2 * tn * jnp.dtype(bias2.dtype).itemsize
    vmem_limit = int(min(vmem_cap,
                         max(8 * 1024 * 1024,
                             weight_db + out_db + bias_db + (4 << 20))))

    grid_spec = pltpu.PrefetchScalarGridSpec(
        num_scalar_prefetch=0,
        grid=grid,
        in_specs=[
            pl.BlockSpec((B, D), lambda j: (0, 0)),    # cls     (resident)
            pl.BlockSpec((1, D), lambda j: (0, 0)),    # gamma   (resident)
            pl.BlockSpec((1, D), lambda j: (0, 0)),    # beta    (resident)
            pl.BlockSpec((D, tn), lambda j: (0, j)),   # weight  (streamed, (D,C) layout)
            pl.BlockSpec((1, tn), lambda j: (0, j)),   # bias    (streamed)
        ],
        out_specs=pl.BlockSpec((B, tn), lambda j: (0, j)),
    )
    # TODO(synk): if an xprof trace on v7x shows DMA exposure at tile
    # boundaries, add pipeline_mode=pl.Buffered(3) to the weight BlockSpec.

    return pl.pallas_call(
        _mlp_head_kernel,
        out_shape=jax.ShapeDtypeStruct((B, C), x.dtype),
        grid_spec=grid_spec,
        compiler_params=pltpu.CompilerParams(
            dimension_semantics=("parallel",),   # shard class tiles across v7x TCs
            vmem_limit_bytes=vmem_limit,
        ),
        cost_estimate=cost,
    )(cls, gamma2, beta2, w_t, bias2)


def mlp_head_reference(x, gamma, beta, weight, bias):
    """All-f32 reference matching the PyTorch module (weight in (C, D) layout)."""
    xf = x.astype(jnp.float32)
    mean = jnp.mean(xf, axis=-1, keepdims=True)
    var = jnp.mean((xf - mean) ** 2, axis=-1, keepdims=True)
    xn = (xf - mean) / jnp.sqrt(var + LN_EPS) * gamma + beta
    cls = xn[:, 0, :]
    return (cls @ weight.T.astype(jnp.float32) + bias).astype(x.dtype)


def _make_inputs(key, B, S, D, C):
    kx, kg, kb, kw, kbias = jax.random.split(key, 5)
    x = jax.random.normal(kx, (B, S, D), dtype=jnp.float32)
    gamma = jnp.ones((D,), dtype=jnp.float32) + 0.01 * jax.random.normal(kg, (D,))
    beta = 0.01 * jax.random.normal(kb, (D,), dtype=jnp.float32)
    weight = 0.02 * jax.random.normal(kw, (C, D), dtype=jnp.float32)  # PyTorch (out, in)
    bias = 0.01 * jax.random.normal(kbias, (C,), dtype=jnp.float32)
    return x, gamma, beta, weight, bias


if __name__ == "__main__":
    key = jax.random.PRNGKey(0)
    k1, k2, k3 = jax.random.split(key, 3)

    # Case 1: small demo shapes (C too small to split -> single full-extent tile).
    B, S, D, C = 2, 8, 32, 16
    x, gamma, beta, weight, bias = _make_inputs(k1, B, S, D, C)
    params = prepare_mlp_head_params(gamma, beta, weight, bias)
    out = jax.block_until_ready(mlp_head(x, params))
    ref = mlp_head_reference(x, gamma, beta, weight, bias)
    assert out.shape == (B, C)
    assert jnp.allclose(out, ref, atol=1e-4, rtol=1e-4)

    # Case 2: streamed/tiled path with bf16 weights; the picker produces an
    # even >= 2-tile grid automatically.  Mixed precision (bf16 weight + bf16
    # MXU LHS, f32 accumulation) -> looser tolerance vs the all-f32 reference.
    B2, S2, D2, C2 = 2, 8, 128, 512
    x2, g2, b2, w2, bs2 = _make_inputs(k2, B2, S2, D2, C2)
    params2 = prepare_mlp_head_params(g2, b2, w2, bs2, weight_dtype=jnp.bfloat16)
    out2 = jax.block_until_ready(mlp_head(x2, params2))
    ref2 = mlp_head_reference(x2, g2, b2, w2, bs2)
    assert out2.shape == (B2, C2)
    assert jnp.allclose(out2, ref2, atol=1.5e-2, rtol=1.5e-2)

    # Case 3: ragged last tile (C not a multiple of the 128-aligned tile):
    # padded OOB weight columns only feed dropped output lanes.
    B3, S3, D3, C3 = 2, 8, 128, 200
    x3, g3, b3, w3, bs3 = _make_inputs(k3, B3, S3, D3, C3)
    params3 = prepare_mlp_head_params(g3, b3, w3, bs3)
    out3 = jax.block_until_ready(mlp_head(x3, params3, class_tile=128))
    ref3 = mlp_head_reference(x3, g3, b3, w3, bs3)
    assert out3.shape == (B3, C3)
    assert jnp.allclose(out3, ref3, atol=1e-3, rtol=1e-3)

    print("KERNEL_OK")
</pallas_src>

<mosaic_0001>
module attributes {stable_mosaic.version = 11 : i64} {
  func.func @_mlp_head_kernel(%arg0: i32, %arg1: memref<2x32xf32, #tpu.memory_space<vmem>>, %arg2: memref<1x32xf32, #tpu.memory_space<vmem>>, %arg3: memref<1x32xf32, #tpu.memory_space<vmem>>, %arg4: memref<32x16xf32, #tpu.memory_space<vmem>>, %arg5: memref<1x16xf32, #tpu.memory_space<vmem>>, %arg6: memref<2x16xf32, #tpu.memory_space<vmem>>) attributes {dimension_semantics = [#tpu.dimension_semantics<parallel>], iteration_bounds = array<i64: 1>, scalar_prefetch = 0 : i64, scratch_operands = 0 : i64, tpu.core_type = #tpu.core_type<tc>, window_params = [{pipeline_mode = #tpu.pipeline_mode<synchronous>, transform_indices = @transform_0, window_bounds = array<i64: 2, 32>}, {pipeline_mode = #tpu.pipeline_mode<synchronous>, transform_indices = @transform_1, window_bounds = array<i64: 1, 32>}, {pipeline_mode = #tpu.pipeline_mode<synchronous>, transform_indices = @transform_2, window_bounds = array<i64: 1, 32>}, {transform_indices = @transform_3, window_bounds = array<i64: 32, 16>}, {transform_indices = @transform_4, window_bounds = array<i64: 1, 16>}, {transform_indices = @transform_5, window_bounds = array<i64: 2, 16>}]} {
    %c0 = arith.constant 0 : index
    %c0_0 = arith.constant 0 : index
    %0 = vector.load %arg1[%c0, %c0_0] : memref<2x32xf32, #tpu.memory_space<vmem>>, vector<2x32xf32>
    %cst = arith.constant dense<0.000000e+00> : vector<2xf32>
    %1 = vector.multi_reduction <add>, %0, %cst [1] : vector<2x32xf32> to vector<2xf32>
    %2 = vector.shape_cast %1 : vector<2xf32> to vector<2x1xf32>
    %cst_1 = arith.constant 3.200000e+01 : f32
    %3 = vector.broadcast %cst_1 : f32 to vector<2x1xf32>
    %4 = arith.divf %2, %3 : vector<2x1xf32>
    %5 = vector.broadcast %4 : vector<2x1xf32> to vector<2x32xf32>
    %6 = arith.subf %0, %5 : vector<2x32xf32>
    %7 = arith.mulf %6, %6 : vector<2x32xf32>
    %cst_2 = arith.constant dense<0.000000e+00> : vector<2xf32>
    %8 = vector.multi_reduction <add>, %7, %cst_2 [1] : vector<2x32xf32> to vector<2xf32>
    %9 = vector.shape_cast %8 : vector<2xf32> to vector<2x1xf32>
    %cst_3 = arith.constant 3.200000e+01 : f32
    %10 = vector.broadcast %cst_3 : f32 to vector<2x1xf32>
    %11 = arith.divf %9, %10 : vector<2x1xf32>
    %cst_4 = arith.constant 9.99999974E-6 : f32
    %12 = vector.broadcast %cst_4 : f32 to vector<2x1xf32>
    %13 = arith.addf %11, %12 : vector<2x1xf32>
    %14 = math.rsqrt %13 : vector<2x1xf32>
    %15 = vector.broadcast %14 : vector<2x1xf32> to vector<2x32xf32>
    %16 = arith.mulf %6, %15 : vector<2x32xf32>
    %c0_5 = arith.constant 0 : index
    %c0_6 = arith.constant 0 : index
    %17 = vector.load %arg2[%c0_5, %c0_6] : memref<1x32xf32, #tpu.memory_space<vmem>>, vector<1x32xf32>
    %18 = vector.broadcast %17 : vector<1x32xf32> to vector<2x32xf32>
    %19 = arith.mulf %16, %18 : vector<2x32xf32>
    %c0_7 = arith.constant 0 : index
    %c0_8 = arith.constant 0 : index
    %20 = vector.load %arg3[%c0_7, %c0_8] : memref<1x32xf32, #tpu.memory_space<vmem>>, vector<1x32xf32>
    %21 = vector.broadcast %20 : vector<1x32xf32> to vector<2x32xf32>
    %22 = arith.addf %19, %21 : vector<2x32xf32>
    %c0_9 = arith.constant 0 : index
    %c0_10 = arith.constant 0 : index
    %23 = vector.load %arg4[%c0_9, %c0_10] : memref<32x16xf32, #tpu.memory_space<vmem>>, vector<32x16xf32>
    %cst_11 = arith.constant dense<0.000000e+00> : vector<2x16xf32>
    %24 = tpu.matmul %22, %23, %cst_11 {dimension_numbers = #tpu.dot_dimension_numbers<[1], [0], [0], [1], [0, 0, 1, 1], [], []>} : vector<2x32xf32>, vector<32x16xf32>, vector<2x16xf32> -> vector<2x16xf32>
    %c0_12 = arith.constant 0 : index
    %c0_13 = arith.constant 0 : index
    %25 = vector.load %arg5[%c0_12, %c0_13] : memref<1x16xf32, #tpu.memory_space<vmem>>, vector<1x16xf32>
    %26 = vector.broadcast %25 : vector<1x16xf32> to vector<2x16xf32>
    %27 = arith.addf %24, %26 : vector<2x16xf32>
    %c0_14 = arith.constant 0 : index
    %c0_15 = arith.constant 0 : index
    %28 = vector.load %arg6[%c0_14, %c0_15] : memref<2x16xf32, #tpu.memory_space<vmem>>, vector<2x16xf32>
    tpu.vector_store %arg6[%c0_14, %c0_15], %27 {strides = array<i32>} : memref<2x16xf32, #tpu.memory_space<vmem>>, vector<2x16xf32>,
    return
  }
  func.func @transform_0(%arg0: i32) -> (i32, i32) {
    %c0_i32 = arith.constant 0 : i32
    %c0_i32_0 = arith.constant 0 : i32
    %c0_i32_1 = arith.constant 0 : i32
    return %c0_i32, %c0_i32_0 : i32, i32
  }
  func.func @transform_1(%arg0: i32) -> (i32, i32) {
    %c0_i32 = arith.constant 0 : i32
    %c0_i32_0 = arith.constant 0 : i32
    %c0_i32_1 = arith.constant 0 : i32
    return %c0_i32, %c0_i32_0 : i32, i32
  }
  func.func @transform_2(%arg0: i32) -> (i32, i32) {
    %c0_i32 = arith.constant 0 : i32
    %c0_i32_0 = arith.constant 0 : i32
    %c0_i32_1 = arith.constant 0 : i32
    return %c0_i32, %c0_i32_0 : i32, i32
  }
  func.func @transform_3(%arg0: i32) -> (i32, i32) {
    %c0_i32 = arith.constant 0 : i32
    %c0_i32_0 = arith.constant 0 : i32
    return %c0_i32, %arg0 : i32, i32
  }
  func.func @transform_4(%arg0: i32) -> (i32, i32) {
    %c0_i32 = arith.constant 0 : i32
    %c0_i32_0 = arith.constant 0 : i32
    return %c0_i32, %arg0 : i32, i32
  }
  func.func @transform_5(%arg0: i32) -> (i32, i32) {
    %c0_i32 = arith.constant 0 : i32
    %c0_i32_0 = arith.constant 0 : i32
    return %c0_i32, %arg0 : i32, i32
  }
}

</mosaic_0001>

<llo_original>
// kernel: tpu_custom_call.1
$region0: #{tpu_custom_call.1}
  #allocation0 [shape = 'u32[]', space=smem, size = 0x4, offset = 0x4, fixed_abs, tag = 'smem constant byte address 0x4 - core index']
  #allocation1 [shape = 'u32[144,128]{1,0:T(1,128)}', space=vmem, size = 0x12000, scoped, tag = 'internal scratch']
  %s0 = inlined_call_operand.vmem [shape: f32[2,32], index: 0, kind: input, shape index: {}]
  %s1 = inlined_call_operand.vmem [shape: f32[1,32], index: 1, kind: input, shape index: {}]
  %s2 = inlined_call_operand.vmem [shape: f32[1,32], index: 2, kind: input, shape index: {}]
  %s3 = inlined_call_operand.vmem [shape: f32[32,16], index: 3, kind: input, shape index: {}]
  %s4 = inlined_call_operand.vmem [shape: f32[1,16], index: 4, kind: input, shape index: {}]
  %s5 = inlined_call_operand.hbm [shape: f32[2,16], index: 5, kind: output, shape index: {}]
  %s6 = sld [smem:[#allocation0]]
  $region30: #{tpu_custom_call.1} parent=0
    _
  %s8 = ssub.s32 1, %s6
  %s9 = scalar_select 0, %s8, %s6
  $region1: #{tpu_custom_call.1} parent=0
    #allocation2 [shape = 'u8[1024]{0}', space=vmem, size = 0x400, scoped, tag = 'output window, operand 0, single buffered']
    #allocation3 [shape = 's32[1]{0}', space=sflag, size = 0x4, scoped, tag = 'scoped memory for tpu_custom_call.1']
    %10 = vsyncpa [#allocation3], 0
    // Predicated region
    $region2: #{tpu_custom_call.1} parent=1 // pred_check
      _
    $region3: #{tpu_custom_call.1} parent=1 // pred_check_branch
      %12 = sbr.rel (0) target = $region5
    $region4: #{tpu_custom_call.1} parent=1 // pred_region
      _
    $region5: #{tpu_custom_call.1} parent=1 // pred_fallthru
      _
    // Predicated region
    $region6: #{tpu_custom_call.1} parent=1 // pred_check
      _
    $region7: #{tpu_custom_call.1} parent=1 // pred_check_branch
      %14 = sbr.rel (0) target = $region9
    $region8: #{tpu_custom_call.1} parent=1 // pred_region
      _
    $region9: #{tpu_custom_call.1} parent=1 // pred_fallthru
      _
    // Predicated region
    $region10: #{tpu_custom_call.1} parent=1 // pred_check
      _
    $region11: #{tpu_custom_call.1} parent=1 // pred_check_branch
      %16 = sbr.rel (0) target = $region13
    $region12: #{tpu_custom_call.1} parent=1 // pred_region
      _
    $region13: #{tpu_custom_call.1} parent=1 // pred_fallthru
      _
    // Predicated region
    $region14: #{tpu_custom_call.1} parent=1 // pred_check
      _
    $region15: #{tpu_custom_call.1} parent=1 // pred_check_branch
      %18 = sbr.rel (0) target = $region17
    $region16: #{tpu_custom_call.1} parent=1 // pred_region
      _
    $region17: #{tpu_custom_call.1} parent=1 // pred_fallthru
      _
    // Predicated region
    $region18: #{tpu_custom_call.1} parent=1 // pred_check
      _
    $region19: #{tpu_custom_call.1} parent=1 // pred_check_branch
      %20 = sbr.rel (0) target = $region21
    $region20: #{tpu_custom_call.1} parent=1 // pred_region
      _
    $region21: #{tpu_custom_call.1} parent=1 // pred_fallthru
      _
    %v21 = vld [vmem:[%s0] sm:$0x3]
    %vm22 = vcmask 254976
    %v23 = vsel %vm22, %v21, 0.0
    %24 = vadd.xlane.f32.xlu0 %v23
    %v25 = vpop.xlane.xlu0 %24
    %v26 = vrcp.pop 32.0
    %v27 = vmul.f32 %v25, %v26
    %v28 = vsub.f32 %v21, %v27
    %v29 = vmul.f32 %v28, %v28
    %v30 = vsel %vm22, %v29, 0.0
    %31 = vadd.xlane.f32.xlu0 %v30
    %v32 = vpop.xlane.xlu0 %31
    %v33 = vmul.f32 %v32, %v26
    %v34 = vadd.f32 %v33, 1e-05
    %v35 = vrsqrt.pop %v34
    %v36 = vmul.f32 %v28, %v35
    %v37 = vld [vmem:[%s1] sm:$0x1]
    %v39 = vlaneseq
    %v40 = vshrl.u32 %v39, 7
    %v41 = vsub.s32 0, %v40
    %v42 = vrot.slane %v37, %v41
    %v44 = vmul.f32 %v36, %v42
    %v45 = vld [vmem:[%s2] sm:$0x1]
    %v47 = vlaneseq
    %v48 = vshrl.u32 %v47, 7
    %v49 = vsub.s32 0, %v48
    %v50 = vrot.slane %v45, %v49
    %v52 = vadd.f32 %v44, %v50
    %v53 = vld [vmem:[%s3] sm:$0xff]
    %v54 = vld [vmem:[%s3 + $0x8] sm:$0xff]
    %v55 = vld [vmem:[%s3 + $0x10] sm:$0xff]
    %v56 = vld [vmem:[%s3 + $0x18] sm:$0xff]
    %v57 = vld [vmem:[%s4] sm:$0x1]
    %v59 = vlaneseq
    %v60 = vshrl.u32 %v59, 7
    %v61 = vsub.s32 0, %v60
    %v62 = vrot.slane %v57, %v61
    %vm64 = vcmask 261120
    %v66 = vsel %vm64, %v52, 0
    %68 = vmatprep.subr.mxu0 0.0
    %69 = vmatpush1.msra.mxu0 %v53
    %70 = vmatprep.subr.mxu0 0.0
    %71 = vmatpush1.msra.mxu0 %v54
    %72 = vmatprep.subr.mxu0 0.0
    %73 = vmatpush1.msra.mxu0 %v55
    %74 = vmatprep.subr.mxu0 0.0
    %75 = vmatpush1.msra.mxu0 %v56
    %76 = vmatprep.subr.mxu0 0.0
    %77 = vmatpush1.msra.mxu0 0.0
    %78 = vmatprep.subr.mxu0 0.0
    %79 = vmatpush1.msra.mxu0 0.0
    %80 = vmatprep.subr.mxu0 0.0
    %81 = vmatpush1.msra.mxu0 0.0
    %82 = vmatprep.subr.mxu0 0.0
    %83 = vmatpush1.msra.mxu0 0.0
    %84 = vmatprep.subr.mxu0 0.0
    %85 = vmatpush1.msra.mxu0 0.0
    %86 = vmatprep.subr.mxu0 0.0
    %87 = vmatpush1.msra.mxu0 0.0
    %88 = vmatprep.subr.mxu0 0.0
    %89 = vmatpush1.msra.mxu0 0.0
    %90 = vmatprep.subr.mxu0 0.0
    %91 = vmatpush1.msra.mxu0 0.0
    %92 = vmatprep.subr.mxu0 0.0
    %93 = vmatpush1.msra.mxu0 0.0
    %94 = vmatprep.subr.mxu0 0.0
    %95 = vmatpush1.msra.mxu0 0.0
    %96 = vmatprep.subr.mxu0 0.0
    %97 = vmatpush1.msra.mxu0 0.0
    %98 = vmatprep.subr.mxu0 0.0
    %99 = vmatpush1.msra.mxu0 0.0
    %100 = vmatprep.subr.mxu0 0.0
    %101 = vmatpush1.msra.mxu0 0.0
    %102 = vmatprep.subr.mxu0 0.0
    %103 = vmatpush1.msra.mxu0 0.0
    %104 = vmatprep.subr.mxu0 0.0
    %105 = vmatpush1.msra.mxu0 0.0
    %106 = vmatprep.subr.mxu0 0.0
    %107 = vmatpush1.msra.mxu0 0.0
    %108 = vmatprep.subr.mxu0 0.0
    %109 = vmatpush1.msra.mxu0 0.0
    %110 = vmatprep.subr.mxu0 0.0
    %111 = vmatpush1.msra.mxu0 0.0
    %112 = vmatprep.subr.mxu0 0.0
    %113 = vmatpush1.msra.mxu0 0.0
    %114 = vmatprep.subr.mxu0 0.0
    %115 = vmatpush1.msra.mxu0 0.0
    %116 = vmatprep.subr.mxu0 0.0
    %117 = vmatpush1.msra.mxu0 0.0
    %118 = vmatprep.subr.mxu0 0.0
    %119 = vmatpush1.msra.mxu0 0.0
    %120 = vmatprep.subr.mxu0 0.0
    %121 = vmatpush1.msra.mxu0 0.0
    %122 = vmatprep.subr.mxu0 0.0
    %123 = vmatpush1.msra.mxu0 0.0
    %124 = vmatprep.subr.mxu0 0.0
    %125 = vmatpush1.msra.mxu0 0.0
    %126 = vmatprep.subr.mxu0 0.0
    %127 = vmatpush1.msra.mxu0 0.0
    %128 = vmatprep.subr.mxu0 0.0
    %129 = vmatpush1.msra.mxu0 0.0
    %130 = vmatprep.subr.mxu0 0.0
    %131 = vmatpush1.msra.mxu0 0.0
    %132 = vmatprep.mubr.f32.mxu0 0.0
    %133 = vmatmul.mubr.f32.gmra.mrb[0].mxu0 %v66
    %v134 = vpop.f32.mrb[0].mxu0
    %v135 = vadd.f32 %v62, %v134
    %v136 = vpop.f32.mrb[0].mxu0
    %137 = vdwg.mxu0
    %vm138 = vcmask 123904
    %139 = vst.msk [vmem:[#allocation2] sm:$0x3] %vm138, %v135
    // Predicated region
    $region22: #{tpu_custom_call.1} parent=1 // pred_check
      _
    $region23: #{tpu_custom_call.1} parent=1 // pred_check_branch
      %141 = sbr.rel (0) target = $region25
    $region24: #{tpu_custom_call.1} parent=1 // pred_region
      %s143 = ssub.s32 32, 32
      %144 = vsyncadd [#allocation3], %s143
      %s146 = sshll.u32 [#allocation2], 4
      %s147 = int_to_ptr.vmem [resolvable:$true] %s146
      %149 = dma.vmem_to_hbm [thread:$0]  %s147, 32, %s5, [#allocation3]
    $region25: #{tpu_custom_call.1} parent=1 // pred_fallthru
      _
    // Predicated region
    $region26: #{tpu_custom_call.1} parent=1 // pred_check
      _
    $region27: #{tpu_custom_call.1} parent=1 // pred_check_branch
      %151 = sbr.rel (0) target = $region29
    $region28: #{tpu_custom_call.1} parent=1 // pred_region
      %152 = dma.done [#allocation3], 32
    $region29: #{tpu_custom_call.1} parent=1 // pred_fallthru
      _
    %153 = vsyncpa [#allocation3], 1

</llo_original>
